<compile_context>
chip_gen: v6e
topology: v6e:2x2x1
jax: 0.10.0
libtpu: 0.0.40
codegen_flags: <defaults>
</compile_context>

<pallas_src>
import numpy as np

import jax
import jax.numpy as jnp
from jax.experimental import pallas as pl
from jax.experimental.pallas import tpu as pltpu


def _round_up(x, m):
    return ((x + m - 1) // m) * m


# ----------------------------------------------------------------------------
# Kernel 1: per-edge messages (edges grouped by relation type) + edge update
# ----------------------------------------------------------------------------
def _edge_msg_kernel(gid_ref,          # (nblk,) scalar prefetch: relation id per block
                     hs_ref,           # (TE, D)   h[src], padded, type-grouped
                     nrm_ref,          # (TE, 1)   edge norm (0 on padding rows)
                     w_ref,            # (D, Dop)  fused circulant weight of this block's relation
                     rel_ref,          # (1, D)    relation embedding row of this block
                     relw_ref,         # (D, Dop)  rel_weight (padded)
                     msg_ref,          # (TE, Dop) out: per-edge message
                     eout_ref):        # (TE, Dop) out: per-edge relation update
    # message:  msg = (norm * h_src) @ (circulant(rel) @ W_{in|out})
    x = (hs_ref[...] * nrm_ref[...]).astype(jnp.bfloat16)
    msg_ref[...] = jnp.dot(x, w_ref[...], preferred_element_type=jnp.float32)
    # edge update:  r @ rel_weight   (r is constant within a relation group)
    r = jnp.broadcast_to(rel_ref[...], (hs_ref.shape[0], rel_ref.shape[1]))
    eout_ref[...] = jnp.dot(r.astype(jnp.bfloat16), relw_ref[...],
                            preferred_element_type=jnp.float32)


# ----------------------------------------------------------------------------
# Kernel 2: dst-sorted segment accumulation + self-loop + bias (node update)
# ----------------------------------------------------------------------------
def _node_update_kernel(lo_ref,        # (n_tiles,) scalar prefetch: first edge block of tile
                        nblk_ref,      # (n_tiles,) scalar prefetch: #edge blocks of tile
                        msg_ref,       # (TE, Dop)  messages, dst-sorted
                        dst_ref,       # (1, TE)    dst node id per message (sentinel on pads)
                        h_ref,         # (TN, D)    node features of this tile
                        wl_ref,        # (D, Dop)   fused self-loop weight
                        bias_ref,      # (1, Dop)
                        out_ref,       # (TN, Dop)
                        acc_ref):      # (TN, Dop)  f32 scratch accumulator
    i = pl.program_id(0)
    j = pl.program_id(1)
    tn = acc_ref.shape[0]

    @pl.when(j == 0)
    def _init():
        acc_ref[...] = jnp.zeros_like(acc_ref)

    @pl.when(j < nblk_ref[i])
    def _accumulate():
        node_ids = jax.lax.broadcasted_iota(
            jnp.int32, (tn, dst_ref.shape[1]), 0) + i * tn
        onehot = (dst_ref[...] == node_ids).astype(jnp.float32)      # (TN, TE)
        acc_ref[...] += jnp.dot(onehot, msg_ref[...],
                                preferred_element_type=jnp.float32)

    @pl.when(j == pl.num_programs(1) - 1)
    def _finalize():
        loop_msg = jnp.dot(h_ref[...].astype(jnp.bfloat16), wl_ref[...],
                           preferred_element_type=jnp.float32)
        out_ref[...] = (acc_ref[...] + loop_msg) * 0.3333333 + bias_ref[...]


# ----------------------------------------------------------------------------
# Wrapper: one CompGraphConv layer (comp_opt='corr', self_loop=True, bias=True)
# ----------------------------------------------------------------------------
def compgcn_layer(h, rel_emb, edge_type, src, dst, norm, is_rev, params,
                  *, te_msg=256, te_agg=256, tn=256):
    N, D = h.shape
    R = rel_emb.shape[0]
    Dout = params["in_w"].shape[1]
    Dop = _round_up(max(Dout, 128), 128)            # lane-dense padded output width
    E = int(edge_type.shape[0])

    # ------------- host-side graph metadata (concrete index arrays) -----------
    et = np.asarray(edge_type, np.int32)
    src_np = np.asarray(src, np.int32)
    dst_np = np.asarray(dst, np.int32)
    rev_np = np.asarray(is_rev, bool)

    te_msg = int(min(te_msg, _round_up(E, 8)))
    te_agg = int(max(128, min(te_agg, _round_up(E, 128))))
    tn = int(min(tn, _round_up(N, 8)))

    # group edges by relation type (MoE-style), pad each group to te_msg rows
    order = np.argsort(et, kind="stable")
    et_sorted = et[order]
    counts = np.bincount(et_sorted, minlength=R)
    csum = np.concatenate([[0], np.cumsum(counts)])
    padded = np.where(counts > 0, _round_up(counts, te_msg), 0)
    pstart = np.concatenate([[0], np.cumsum(padded)])
    E_pad1 = int(pstart[-1])
    nblk1 = E_pad1 // te_msg
    within = np.arange(E) - csum[et_sorted]
    pos_pad = (pstart[et_sorted] + within).astype(np.int32)
    pos_of_edge = np.empty(E, np.int32)
    pos_of_edge[order] = pos_pad                    # padded slot of original edge e
    blk_gid = np.zeros(nblk1, np.int32)
    for t in range(R):
        if padded[t]:
            b0 = int(pstart[t]) // te_msg
            blk_gid[b0:b0 + int(padded[t]) // te_msg] = t

    # reverse-edge flag per relation type (is_rev is a function of edge_type in CompGCN)
    rev_type = np.zeros(R, bool)
    rev_type[et] = rev_np

    # ------------- fused circulant weights (cheap wrapper precompute) ---------
    # ccorr(a, b) = a @ C_b  with  C_b[i, k] = b[(i + k) mod D]
    idx = (jnp.arange(D)[:, None] + jnp.arange(D)[None, :]) % D          # (D, D)
    c_rel = rel_emb[:, idx]                                              # (R, D, D)
    w_sel = jnp.where(jnp.asarray(rev_type)[:, None, None],
                      params["out_w"][None], params["in_w"][None])       # (R, D, Dout)
    fused_w = jnp.einsum("rik,rko->rio", c_rel, w_sel)
    fused_w = jnp.pad(fused_w, ((0, 0), (0, 0), (0, Dop - Dout))).astype(jnp.bfloat16)

    w_loop = jnp.pad(params["loop_rel"][0][idx] @ params["loop_w"],
                     ((0, 0), (0, Dop - Dout))).astype(jnp.bfloat16)     # (D, Dop)
    rel_w = jnp.pad(params["rel_w"], ((0, 0), (0, Dop - Dout))).astype(jnp.bfloat16)
    bias = jnp.pad(params["bias"], ((0, 0), (0, Dop - Dout)))            # (1, Dop) f32
    rel3 = rel_emb.reshape(R, 1, D)

    # ------------- kernel-1 inputs: gathered h[src] / norm, padded layout -----
    h_src = h[jnp.asarray(src_np)]                                       # (E, D) XLA gather
    norm_col = jnp.asarray(norm, jnp.float32).reshape(E, 1)
    pos = jnp.asarray(pos_of_edge)
    hs_pad = jnp.zeros((E_pad1, D), jnp.float32).at[pos].set(h_src)
    nrm_pad = jnp.zeros((E_pad1, 1), jnp.float32).at[pos].set(norm_col)

    grid1 = pltpu.PrefetchScalarGridSpec(
        num_scalar_prefetch=1,
        grid=(nblk1,),
        in_specs=[
            pl.BlockSpec((te_msg, D), lambda b, gid: (b, 0)),
            pl.BlockSpec((te_msg, 1), lambda b, gid: (b, 0)),
            pl.BlockSpec((None, D, Dop), lambda b, gid: (gid[b], 0, 0)),
            pl.BlockSpec((None, 1, D), lambda b, gid: (gid[b], 0, 0)),
            pl.BlockSpec((D, Dop), lambda b, gid: (0, 0)),
        ],
        out_specs=[
            pl.BlockSpec((te_msg, Dop), lambda b, gid: (b, 0)),
            pl.BlockSpec((te_msg, Dop), lambda b, gid: (b, 0)),
        ],
    )
    msg_pad, eout_pad = pl.pallas_call(
        _edge_msg_kernel,
        out_shape=(jax.ShapeDtypeStruct((E_pad1, Dop), jnp.float32),
                   jax.ShapeDtypeStruct((E_pad1, Dop), jnp.float32)),
        grid_spec=grid1,
        compiler_params=pltpu.CompilerParams(
            dimension_semantics=("parallel",),
            vmem_limit_bytes=32 * 1024 * 1024),
    )(jnp.asarray(blk_gid), hs_pad, nrm_pad, fused_w, rel3, rel_w)

    # ------------- kernel-2 inputs: messages re-sorted by destination ---------
    perm_dst = np.argsort(dst_np, kind="stable")
    dst_sorted = dst_np[perm_dst]
    N_pad = _round_up(N, tn)
    n_tiles = N_pad // tn
    E_pad2 = max(_round_up(E, te_agg), te_agg)
    nblk2 = E_pad2 // te_agg

    lo = np.searchsorted(dst_sorted, np.arange(n_tiles) * tn, side="left")
    hi = np.searchsorted(dst_sorted, (np.arange(n_tiles) + 1) * tn, side="left")
    blk_lo = np.where(hi > lo, lo // te_agg, 0).astype(np.int32)
    blk_cnt = np.where(hi > lo, (hi - 1) // te_agg - lo // te_agg + 1, 0).astype(np.int32)
    max_blk = int(max(int(blk_cnt.max()), 1))

    msg_dst = msg_pad[jnp.asarray(pos_of_edge[perm_dst])]                # (E, Dop)
    msg_dst = jnp.pad(msg_dst, ((0, E_pad2 - E), (0, 0)))
    dst_lanes = np.full((1, E_pad2), N_pad, np.int32)                    # sentinel on pads
    dst_lanes[0, :E] = dst_sorted
    h_pad = jnp.pad(h, ((0, N_pad - N), (0, 0)))

    grid2 = pltpu.PrefetchScalarGridSpec(
        num_scalar_prefetch=2,
        grid=(n_tiles, max_blk),
        in_specs=[
            pl.BlockSpec((te_agg, Dop),
                         lambda i, j, lo_r, nb_r: (jnp.minimum(lo_r[i] + j, nblk2 - 1), 0)),
            pl.BlockSpec((1, te_agg),
                         lambda i, j, lo_r, nb_r: (0, jnp.minimum(lo_r[i] + j, nblk2 - 1))),
            pl.BlockSpec((tn, D), lambda i, j, lo_r, nb_r: (i, 0)),
            pl.BlockSpec((D, Dop), lambda i, j, lo_r, nb_r: (0, 0)),
            pl.BlockSpec((1, Dop), lambda i, j, lo_r, nb_r: (0, 0)),
        ],
        out_specs=pl.BlockSpec((tn, Dop), lambda i, j, lo_r, nb_r: (i, 0)),
        scratch_shapes=[pltpu.VMEM((tn, Dop), jnp.float32)],
    )
    node_pad = pl.pallas_call(
        _node_update_kernel,
        out_shape=jax.ShapeDtypeStruct((N_pad, Dop), jnp.float32),
        grid_spec=grid2,
        compiler_params=pltpu.CompilerParams(
            dimension_semantics=("parallel", "arbitrary"),
            vmem_limit_bytes=32 * 1024 * 1024),
    )(jnp.asarray(blk_lo), jnp.asarray(blk_cnt), msg_dst, jnp.asarray(dst_lanes),
      h_pad, w_loop, bias)

    node_out = node_pad[:N, :Dout]
    edge_out = eout_pad[pos][:, :Dout]
    return node_out, edge_out


def train_model_forward(params, node_ids, edge_type, src, dst, norm, is_rev):
    """TrainModel.forward with nlabel=0 (unsupervised): returns ((h, r), None)."""
    h = params["node_emb"][node_ids]                 # embedding lookup (glue)
    h_out, r_out = compgcn_layer(h, params["rel_emb"], edge_type, src, dst,
                                 norm, is_rev, params)
    return (h_out, r_out), None                      # pred is None (unsupervised)


# ----------------------------------------------------------------------------
# Deterministic parameter init (matches shapes from the torch __init__)
# ----------------------------------------------------------------------------
def xavier_uniform(key, shape, gain=1.0):
    fan_in, fan_out = shape[0], shape[1]
    bound = gain * (6.0 / (fan_in + fan_out)) ** 0.5
    return jax.random.uniform(key, shape, jnp.float32, -bound, bound)


def make_params(key, num_nodes, num_rels, d):
    ks = jax.random.split(key, 8)
    scale = 1.0 / (d ** 0.5)
    return {
        "node_emb": jax.random.uniform(ks[0], (num_nodes, d), jnp.float32, -scale, scale),
        "rel_emb": jax.random.uniform(ks[1], (2 * num_rels, d), jnp.float32, -scale, scale),
        "in_w": xavier_uniform(ks[2], (d, d)),
        "out_w": xavier_uniform(ks[3], (d, d)),
        "rel_w": xavier_uniform(ks[4], (d, d)),
        "loop_w": xavier_uniform(ks[5], (d, d)),
        "loop_rel": xavier_uniform(ks[6], (1, d)),
        "bias": jnp.zeros((1, d), jnp.float32),
        # w_relation / edge_fc exist in TrainModel but are unused in forward()
        "w_relation": xavier_uniform(ks[7], (num_rels, d), gain=2.0 ** 0.5),
    }


# ----------------------------------------------------------------------------
# Pure-JAX reference (direct roll-based ccorr + scatter-add)
# ----------------------------------------------------------------------------
def _ccorr_ref(a, b):
    d = a.shape[-1]
    b = jnp.broadcast_to(b, a.shape)
    return sum(a[:, i: i + 1] * jnp.roll(b, -i, axis=-1) for i in range(d))


def reference_forward(params, node_ids, edge_type, src, dst, norm, is_rev):
    h = params["node_emb"][node_ids]
    r = params["rel_emb"][edge_type]
    N, D = h.shape
    comp = _ccorr_ref(h[src], r)
    msg_in = comp @ params["in_w"]
    msg_out = comp @ params["out_w"]
    msg = jnp.where(is_rev[:, None], msg_out, msg_in) * norm.reshape(-1, 1)
    agg = jnp.zeros((N, D), jnp.float32).at[dst].add(msg)
    loop_comp = _ccorr_ref(h, params["loop_rel"])
    node_out = (agg + loop_comp @ params["loop_w"]) * 0.3333333 + params["bias"]
    edge_out = r @ params["rel_w"]
    return node_out, edge_out


# ----------------------------------------------------------------------------
if __name__ == "__main__":
    key = jax.random.PRNGKey(0)
    NUM_NODES, NUM_RELS, D, E = 16, 3, 32, 24

    k_par, k_src, k_dst, k_et, k_nrm = jax.random.split(key, 5)
    params = make_params(k_par, NUM_NODES, NUM_RELS, D)

    node_ids = jnp.arange(NUM_NODES, dtype=jnp.int32)
    src = jax.random.randint(k_src, (E,), 0, NUM_NODES, dtype=jnp.int32)
    dst = jax.random.randint(k_dst, (E,), 0, NUM_NODES, dtype=jnp.int32)
    edge_type = jax.random.randint(k_et, (E,), 0, 2 * NUM_RELS, dtype=jnp.int32)
    is_rev = edge_type >= NUM_RELS                       # reverse-edge flag
    norm = jax.random.uniform(k_nrm, (E, 1), jnp.float32, 0.1, 1.0)

    (h_out, r_out), pred = train_model_forward(
        params, node_ids, edge_type, src, dst, norm, is_rev
    )
    jax.block_until_ready((h_out, r_out))

    h_ref, r_ref = reference_forward(params, node_ids, edge_type, src, dst, norm, is_rev)
    np.testing.assert_allclose(np.asarray(h_out), np.asarray(h_ref), rtol=5e-2, atol=5e-3)
    np.testing.assert_allclose(np.asarray(r_out), np.asarray(r_ref), rtol=5e-2, atol=5e-3)
    assert pred is None  # unsupervised (nlabel=0)

    print("KERNEL_OK")
</pallas_src>

<mosaic_0001>
module attributes {stable_mosaic.version = 11 : i64} {
  func.func @_edge_msg_kernel(%arg0: i32, %arg1: memref<6xi32, #tpu.memory_space<smem>>, %arg2: memref<24x32xf32, #tpu.memory_space<vmem>>, %arg3: memref<24x1xf32, #tpu.memory_space<vmem>>, %arg4: memref<1x32x128xbf16, #tpu.memory_space<vmem>>, %arg5: memref<1x1x32xf32, #tpu.memory_space<vmem>>, %arg6: memref<32x128xbf16, #tpu.memory_space<vmem>>, %arg7: memref<24x128xf32, #tpu.memory_space<vmem>>, %arg8: memref<24x128xf32, #tpu.memory_space<vmem>>) attributes {dimension_semantics = [#tpu.dimension_semantics<parallel>], iteration_bounds = array<i64: 6>, scalar_prefetch = 1 : i64, scratch_operands = 0 : i64, tpu.core_type = #tpu.core_type<tc>, window_params = [{transform_indices = @transform_0, window_bounds = array<i64: 24, 32>}, {transform_indices = @transform_1, window_bounds = array<i64: 24, 1>}, {transform_indices = @transform_2, window_bounds = array<i64: 1, 32, 128>}, {transform_indices = @transform_3, window_bounds = array<i64: 1, 1, 32>}, {pipeline_mode = #tpu.pipeline_mode<synchronous>, transform_indices = @transform_4, window_bounds = array<i64: 32, 128>}, {transform_indices = @transform_5, window_bounds = array<i64: 24, 128>}, {transform_indices = @transform_6, window_bounds = array<i64: 24, 128>}]} {
    %c0 = arith.constant 0 : index
    %c0_0 = arith.constant 0 : index
    %0 = vector.load %arg2[%c0, %c0_0] : memref<24x32xf32, #tpu.memory_space<vmem>>, vector<24x32xf32>
    %c0_1 = arith.constant 0 : index
    %c0_2 = arith.constant 0 : index
    %1 = vector.load %arg3[%c0_1, %c0_2] : memref<24x1xf32, #tpu.memory_space<vmem>>, vector<24x1xf32>
    %2 = vector.broadcast %1 : vector<24x1xf32> to vector<24x32xf32>
    %3 = arith.mulf %0, %2 : vector<24x32xf32>
    %4 = arith.truncf %3 : vector<24x32xf32> to vector<24x32xbf16>
    %c0_3 = arith.constant 0 : index
    %c0_4 = arith.constant 0 : index
    %c0_5 = arith.constant 0 : index
    %5 = vector.load %arg4[%c0_3, %c0_4, %c0_5] : memref<1x32x128xbf16, #tpu.memory_space<vmem>>, vector<1x32x128xbf16>
    %6 = vector.shape_cast %5 : vector<1x32x128xbf16> to vector<32x128xbf16>
    %cst = arith.constant dense<0.000000e+00> : vector<24x128xf32>
    %7 = tpu.matmul %4, %6, %cst {dimension_numbers = #tpu.dot_dimension_numbers<[1], [0], [0], [1], [0, 0, 1, 1], [], []>} : vector<24x32xbf16>, vector<32x128xbf16>, vector<24x128xf32> -> vector<24x128xf32>
    %c0_6 = arith.constant 0 : index
    %c0_7 = arith.constant 0 : index
    %8 = vector.load %arg7[%c0_6, %c0_7] : memref<24x128xf32, #tpu.memory_space<vmem>>, vector<24x128xf32>
    tpu.vector_store %arg7[%c0_6, %c0_7], %7 {strides = array<i32>} : memref<24x128xf32, #tpu.memory_space<vmem>>, vector<24x128xf32>,
    %c0_8 = arith.constant 0 : index
    %c0_9 = arith.constant 0 : index
    %c0_10 = arith.constant 0 : index
    %9 = vector.load %arg5[%c0_8, %c0_9, %c0_10] : memref<1x1x32xf32, #tpu.memory_space<vmem>>, vector<1x1x32xf32>
    %10 = vector.shape_cast %9 : vector<1x1x32xf32> to vector<1x32xf32>
    %11 = vector.shape_cast %10 : vector<1x32xf32> to vector<1x32xf32>
    %12 = vector.broadcast %11 : vector<1x32xf32> to vector<24x32xf32>
    %13 = arith.truncf %12 : vector<24x32xf32> to vector<24x32xbf16>
    %c0_11 = arith.constant 0 : index
    %c0_12 = arith.constant 0 : index
    %14 = vector.load %arg6[%c0_11, %c0_12] : memref<32x128xbf16, #tpu.memory_space<vmem>>, vector<32x128xbf16>
    %cst_13 = arith.constant dense<0.000000e+00> : vector<24x128xf32>
    %15 = tpu.matmul %13, %14, %cst_13 {dimension_numbers = #tpu.dot_dimension_numbers<[1], [0], [0], [1], [0, 0, 1, 1], [], []>} : vector<24x32xbf16>, vector<32x128xbf16>, vector<24x128xf32> -> vector<24x128xf32>
    %c0_14 = arith.constant 0 : index
    %c0_15 = arith.constant 0 : index
    %16 = vector.load %arg8[%c0_14, %c0_15] : memref<24x128xf32, #tpu.memory_space<vmem>>, vector<24x128xf32>
    tpu.vector_store %arg8[%c0_14, %c0_15], %15 {strides = array<i32>} : memref<24x128xf32, #tpu.memory_space<vmem>>, vector<24x128xf32>,
    return
  }
  func.func @transform_0(%arg0: i32, %arg1: memref<6xi32, #tpu.memory_space<smem>>) -> (i32, i32) {
    %c0_i32 = arith.constant 0 : i32
    %c0_i32_0 = arith.constant 0 : i32
    return %arg0, %c0_i32 : i32, i32
  }
  func.func @transform_1(%arg0: i32, %arg1: memref<6xi32, #tpu.memory_space<smem>>) -> (i32, i32) {
    %c0_i32 = arith.constant 0 : i32
    %c0_i32_0 = arith.constant 0 : i32
    return %arg0, %c0_i32 : i32, i32
  }
  func.func @transform_2(%arg0: i32, %arg1: memref<6xi32, #tpu.memory_space<smem>>) -> (i32, i32, i32) {
    %0 = arith.index_cast %arg0 : i32 to index
    %1 = memref.load %arg1[%0] : memref<6xi32, #tpu.memory_space<smem>>
    %c0_i32 = arith.constant 0 : i32
    %c0_i32_0 = arith.constant 0 : i32
    %c0_i32_1 = arith.constant 0 : i32
    return %1, %c0_i32, %c0_i32_0 : i32, i32, i32
  }
  func.func @transform_3(%arg0: i32, %arg1: memref<6xi32, #tpu.memory_space<smem>>) -> (i32, i32, i32) {
    %0 = arith.index_cast %arg0 : i32 to index
    %1 = memref.load %arg1[%0] : memref<6xi32, #tpu.memory_space<smem>>
    %c0_i32 = arith.constant 0 : i32
    %c0_i32_0 = arith.constant 0 : i32
    %c0_i32_1 = arith.constant 0 : i32
    return %1, %c0_i32, %c0_i32_0 : i32, i32, i32
  }
  func.func @transform_4(%arg0: i32, %arg1: memref<6xi32, #tpu.memory_space<smem>>) -> (i32, i32) {
    %c0_i32 = arith.constant 0 : i32
    %c0_i32_0 = arith.constant 0 : i32
    %c0_i32_1 = arith.constant 0 : i32
    return %c0_i32, %c0_i32_0 : i32, i32
  }
  func.func @transform_5(%arg0: i32, %arg1: memref<6xi32, #tpu.memory_space<smem>>) -> (i32, i32) {
    %c0_i32 = arith.constant 0 : i32
    %c0_i32_0 = arith.constant 0 : i32
    return %arg0, %c0_i32 : i32, i32
  }
  func.func @transform_6(%arg0: i32, %arg1: memref<6xi32, #tpu.memory_space<smem>>) -> (i32, i32) {
    %c0_i32 = arith.constant 0 : i32
    %c0_i32_0 = arith.constant 0 : i32
    return %arg0, %c0_i32 : i32, i32
  }
}

</mosaic_0001>

<llo_original>
// kernel: tpu_custom_call.1
$region0: #{tpu_custom_call.1}
  #allocation0 [shape = 'u32[]', space=smem, size = 0x4, offset = 0x4, fixed_abs, tag = 'smem constant byte address 0x4 - core index']
  #allocation1 [shape = 'u32[144,128]{1,0:T(1,128)}', space=vmem, size = 0x12000, scoped, tag = 'internal scratch']
  #allocation2 [shape = 's32[1]{0}', space=sflag, size = 0x4, scoped, tag = 'scoped memory for tpu_custom_call.1']
  #allocation3 [shape = 'u8[512]{0}', space=smem, size = 0x200, scoped, tag = 'prefetched SMEM operand 0']
  %s0 = inlined_call_operand.vmem [shape: s32[6], index: 0, kind: input, shape index: {}]
  %s1 = inlined_call_operand.vmem [shape: f32[144,32], index: 1, kind: input, shape index: {}]
  %s2 = inlined_call_operand.vmem [shape: f32[144,1], index: 2, kind: input, shape index: {}]
  %s3 = inlined_call_operand.vmem [shape: bf16[6,32,128], index: 3, kind: input, shape index: {}]
  %s4 = inlined_call_operand.vmem [shape: f32[6,1,32], index: 4, kind: input, shape index: {}]
  %s5 = inlined_call_operand.vmem [shape: bf16[32,128], index: 5, kind: input, shape index: {}]
  %s6 = inlined_call_operand.hbm [shape: f32[144,128], index: 6, kind: output, shape index: {0}]
  %s7 = inlined_call_operand.hbm [shape: f32[144,128], index: 7, kind: output, shape index: {1}]
  %8 = xla_tuple %s6, %s7
  %s9 = sld [smem:[#allocation0]]
  $region61: #{tpu_custom_call.1} parent=0
    _
  %s11 = ssub.s32 1, %s9
  %s12 = scalar_select 0, %s11, %s9
  %s13 = sshll.u32 %s0, 4
  %s14 = int_to_ptr.vmem [resolvable:$true] %s13
  %16 = dma.vmem_to_smem %s14, 16, [#allocation3], [#allocation2]
  %17 = dma.done [#allocation2], 16
  %18 = sfence
  $region1: #{tpu_custom_call.1} parent=0
    #allocation4 [shape = 'u8[24576]{0}', space=vmem, size = 0x6000, scoped, tag = 'output window, operand 0']
    #allocation5 [shape = 's32[2]{0}', space=sflag, size = 0x8, scoped, tag = 'scoped memory for tpu_custom_call.1']
    #allocation6 [shape = 'u8[24576]{0}', space=vmem, size = 0x6000, scoped, tag = 'output window, operand 1']
    #allocation7 [shape = 's32[2]{0}', space=sflag, size = 0x8, scoped, tag = 'scoped memory for tpu_custom_call.1']
    %19 = vsyncpa [#allocation5], 0
    %s20 = scalar_lea.sflag [#allocation5], 1
    %21 = vsyncpa %s20, 0
    %22 = vsyncpa [#allocation7], 0
    %s23 = scalar_lea.sflag [#allocation7], 1
    %24 = vsyncpa %s23, 0
    loop: start=0, step=1, limit=8
    $region2: #{tpu_custom_call.1} parent=1 // loop_pre_header
      _
    $region3: #{tpu_custom_call.1} parent=1 // loop_header
      %s26 = sphi 0, %s30
      %p27 = scmp.ge.s32.totalorder %s26, 8
      %s36 = sphi 0, %s38
      %s39 = sphi 0, %s36
      %s40 = sphi 0, %s39
      %s56 = sphi 0, %s40
      %s62 = sphi 0, %s64
      %s65 = sphi 0, %s62
      %s66 = sphi 0, %s65
      %s82 = sphi 0, %s66
      %s90 = sphi 0, %s92
      %s93 = sphi 0, %s90
      %s94 = sphi 0, %s93
      %s110 = sphi 0, %s94
      %s118 = sphi 0, %s120
      %s121 = sphi 0, %s118
      %s122 = sphi 0, %s121
      %s138 = sphi 0, %s122
      %s142 = sphi 0, %s142
      %s144 = sphi 0, %s142
      %s145 = sphi 0, %s144
      %s159 = sphi 0, %s145
      %s165 = sphi 0, %s167
      %s168 = sphi 0, %s165
      %s169 = sphi 0, %s168
      %s185 = sphi 0, %s169
      %s191 = sphi 0, %s193
      %s194 = sphi 0, %s191
      %s195 = sphi 0, %s194
      %s211 = sphi 0, %s195
    $region4: #{tpu_custom_call.1} parent=1 // loop_header_branch
      %29 = sbr.rel (%p27) target = $region8
    $region5: #{tpu_custom_call.1} parent=1 // loop_body
      %s31 = ssub.s32 %s26, 1
      %s32 = ssub.s32 %s26, 2
      %s33 = sadd.s32 %s26, 1
      %s34 = ssub.s32 %s26, %s33
      %p35 = scmp.eq.s32.totalorder %s34, 0
      %s37 = sadd.s32 %s36, 1
      %s38 = scalar_select %p35, %s36, %s37
      %p41 = pneg %p35
      %p42 = scmp.eq.s32.totalorder %s26, 5
      %p43 = por %p41, %p42
      %p44 = scmp.ne.s32.totalorder %s36, %s39
      %p45 = scmp.eq.s32.totalorder %s26, 0
      %p46 = por %p44, %p45
      %p47 = scmp.ne.s32.totalorder %s36, %s39
      %p48 = scmp.eq.s32.totalorder %s31, 5
      %p49 = por %p47, %p48
      %p50 = scmp.ne.s32.totalorder %s39, %s40
      %p51 = scmp.eq.s32.totalorder %s31, 0
      %p52 = por %p50, %p51
      %p53 = scmp.ne.s32.totalorder %s39, %s40
      %p54 = scmp.eq.s32.totalorder %s32, 5
      %p55 = por %p53, %p54
      %p57 = scmp.ne.s32.totalorder %s40, %s56
      %p58 = scmp.eq.s32.totalorder %s32, 0
      %p59 = por %p57, %p58
      %s60 = ssub.s32 %s26, %s33
      %p61 = scmp.eq.s32.totalorder %s60, 0
      %s63 = sadd.s32 %s62, 1
      %s64 = scalar_select %p61, %s62, %s63
      %p67 = pneg %p61
      %p68 = scmp.eq.s32.totalorder %s26, 5
      %p69 = por %p67, %p68
      %p70 = scmp.ne.s32.totalorder %s62, %s65
      %p71 = scmp.eq.s32.totalorder %s26, 0
      %p72 = por %p70, %p71
      %p73 = scmp.ne.s32.totalorder %s62, %s65
      %p74 = scmp.eq.s32.totalorder %s31, 5
      %p75 = por %p73, %p74
      %p76 = scmp.ne.s32.totalorder %s65, %s66
      %p77 = scmp.eq.s32.totalorder %s31, 0
      %p78 = por %p76, %p77
      %p79 = scmp.ne.s32.totalorder %s65, %s66
      %p80 = scmp.eq.s32.totalorder %s32, 5
      %p81 = por %p79, %p80
      %p83 = scmp.ne.s32.totalorder %s66, %s82
      %p84 = scmp.eq.s32.totalorder %s32, 0
      %p85 = por %p83, %p84
      %s86 = sld [smem:[#allocation3 + %s26]]
      %s87 = sld [smem:[#allocation3 + %s33]]
      %s88 = ssub.s32 %s86, %s87
      %p89 = scmp.eq.s32.totalorder %s88, 0
      %s91 = sadd.s32 %s90, 1
      %s92 = scalar_select %p89, %s90, %s91
      %p95 = pneg %p89
      %p96 = scmp.eq.s32.totalorder %s26, 5
      %p97 = por %p95, %p96
      %p98 = scmp.ne.s32.totalorder %s90, %s93
      %p99 = scmp.eq.s32.totalorder %s26, 0
      %p100 = por %p98, %p99
      %p101 = scmp.ne.s32.totalorder %s90, %s93
      %p102 = scmp.eq.s32.totalorder %s31, 5
      %p103 = por %p101, %p102
      %p104 = scmp.ne.s32.totalorder %s93, %s94
      %p105 = scmp.eq.s32.totalorder %s31, 0
      %p106 = por %p104, %p105
      %p107 = scmp.ne.s32.totalorder %s93, %s94
      %p108 = scmp.eq.s32.totalorder %s32, 5
      %p109 = por %p107, %p108
      %p111 = scmp.ne.s32.totalorder %s94, %s110
      %p112 = scmp.eq.s32.totalorder %s32, 0
      %p113 = por %p111, %p112
      %s114 = sld [smem:[#allocation3 + %s26]]
      %s115 = sld [smem:[#allocation3 + %s33]]
      %s116 = ssub.s32 %s114, %s115
      %p117 = scmp.eq.s32.totalorder %s116, 0
      %s119 = sadd.s32 %s118, 1
      %s120 = scalar_select %p117, %s118, %s119
      %p123 = pneg %p117
      %p124 = scmp.eq.s32.totalorder %s26, 5
      %p125 = por %p123, %p124
      %p126 = scmp.ne.s32.totalorder %s118, %s121
      %p127 = scmp.eq.s32.totalorder %s26, 0
      %p128 = por %p126, %p127
      %p129 = scmp.ne.s32.totalorder %s118, %s121
      %p130 = scmp.eq.s32.totalorder %s31, 5
      %p131 = por %p129, %p130
      %p132 = scmp.ne.s32.totalorder %s121, %s122
      %p133 = scmp.eq.s32.totalorder %s31, 0
      %p134 = por %p132, %p133
      %p135 = scmp.ne.s32.totalorder %s121, %s122
      %p136 = scmp.eq.s32.totalorder %s32, 5
      %p137 = por %p135, %p136
      %p139 = scmp.ne.s32.totalorder %s122, %s138
      %p140 = scmp.eq.s32.totalorder %s32, 0
      %p141 = por %p139, %p140
      %s143 = sadd.s32 %s142, 1
      %p146 = scmp.eq.s32.totalorder %s26, 5
      %p147 = scmp.ne.s32.totalorder %s142, %s144
      %p148 = scmp.eq.s32.totalorder %s26, 0
      %p149 = por %p147, %p148
      %p150 = scmp.ne.s32.totalorder %s142, %s144
      %p151 = scmp.eq.s32.totalorder %s31, 5
      %p152 = por %p150, %p151
      %p153 = scmp.ne.s32.totalorder %s144, %s145
      %p154 = scmp.eq.s32.totalorder %s31, 0
      %p155 = por %p153, %p154
      %p156 = scmp.ne.s32.totalorder %s144, %s145
      %p157 = scmp.eq.s32.totalorder %s32, 5
      %p158 = por %p156, %p157
      %p160 = scmp.ne.s32.totalorder %s145, %s159
      %p161 = scmp.eq.s32.totalorder %s32, 0
      %p162 = por %p160, %p161
      %s163 = ssub.s32 %s26, %s33
      %p164 = scmp.eq.s32.totalorder %s163, 0
      %s166 = sadd.s32 %s165, 1
      %s167 = scalar_select %p164, %s165, %s166
      %p170 = pneg %p164
      %p171 = scmp.eq.s32.totalorder %s26, 5
      %p172 = por %p170, %p171
      %p173 = scmp.ne.s32.totalorder %s165, %s168
      %p174 = scmp.eq.s32.totalorder %s26, 0
      %p175 = por %p173, %p174
      %p176 = scmp.ne.s32.totalorder %s165, %s168
      %p177 = scmp.eq.s32.totalorder %s31, 5
      %p178 = por %p176, %p177
      %p179 = scmp.ne.s32.totalorder %s168, %s169
      %p180 = scmp.eq.s32.totalorder %s31, 0
      %p181 = por %p179, %p180
      %p182 = scmp.ne.s32.totalorder %s168, %s169
      %p183 = scmp.eq.s32.totalorder %s32, 5
      %p184 = por %p182, %p183
      %p186 = scmp.ne.s32.totalorder %s169, %s185
      %p187 = scmp.eq.s32.totalorder %s32, 0
      %p188 = por %p186, %p187
      %s189 = ssub.s32 %s26, %s33
      %p190 = scmp.eq.s32.totalorder %s189, 0
      %s192 = sadd.s32 %s191, 1
      %s193 = scalar_select %p190, %s191, %s192
      %p196 = pneg %p190
      %p197 = scmp.eq.s32.totalorder %s26, 5
      %p198 = por %p196, %p197
      %p199 = scmp.ne.s32.totalorder %s191, %s194
      %p200 = scmp.eq.s32.totalorder %s26, 0
      %p201 = por %p199, %p200
      %p202 = scmp.ne.s32.totalorder %s191, %s194
      %p203 = scmp.eq.s32.totalorder %s31, 5
      %p204 = por %p202, %p203
      %p205 = scmp.ne.s32.totalorder %s194, %s195
      %p206 = scmp.eq.s32.totalorder %s31, 0
      %p207 = por %p205, %p206
      %p208 = scmp.ne.s32.totalorder %s194, %s195
      %p209 = scmp.eq.s32.totalorder %s32, 5
      %p210 = por %p208, %p209
      %p212 = scmp.ne.s32.totalorder %s195, %s211
      %p213 = scmp.eq.s32.totalorder %s32, 0
      %p214 = por %p212, %p213
      %p215 = scmp.le.s32.totalorder 1, %s26
      %p216 = scmp.lt.s32.totalorder %s26, 7
      %p217 = pnand %p215, %p216
      %p218 = pneg %p217
      // Predicated region
      $region9: #{tpu_custom_call.1} parent=5 // pred_check
        _
      $region10: #{tpu_custom_call.1} parent=5 // pred_check_branch
        %220 = sbr.rel (%p217) target = $region12
      $region11: #{tpu_custom_call.1} parent=5 // pred_region
        %s221 = ssub.s32 %s26, 1
        // Predicated region
        $region13: #{tpu_custom_call.1} parent=11 // pred_check
          %p222 = pneg %p155
        $region14: #{tpu_custom_call.1} parent=11 // pred_check_branch
          %224 = sbr.rel (%p222) target = $region16
        $region15: #{tpu_custom_call.1} parent=11 // pred_region
          _
        $region16: #{tpu_custom_call.1} parent=11 // pred_fallthru
          _
      $region12: #{tpu_custom_call.1} parent=5 // pred_fallthru
        _
      %p225 = scmp.lt.s32.totalorder %s26, 6
      // Predicated region
      $region17: #{tpu_custom_call.1} parent=5 // pred_check
        %p226 = pneg %p225
      $region18: #{tpu_custom_call.1} parent=5 // pred_check_branch
        %228 = sbr.rel (%p226) target = $region20
      $region19: #{tpu_custom_call.1} parent=5 // pred_region
        // Predicated region
        $region21: #{tpu_custom_call.1} parent=19 // pred_check
          %p229 = pneg %p46
        $region22: #{tpu_custom_call.1} parent=19 // pred_check_branch
          %231 = sbr.rel (%p229) target = $region24
        $region23: #{tpu_custom_call.1} parent=19 // pred_region
          %s232 = smul.u32 3, %s26
          %p233 = scmp.lt.s32.totalorder %s232, 17
          %s234 = scalar_select %p233, %s232, 17
          %s235 = smul.addr %s234, 8
          %s236 = scalar_lea.vmem %s1, %s235
          %s237 = smul.u32 3, %s26
        $region24: #{tpu_custom_call.1} parent=19 // pred_fallthru
          _
        // Predicated region
        $region25: #{tpu_custom_call.1} parent=19 // pred_check
          %p238 = pneg %p72
        $region26: #{tpu_custom_call.1} parent=19 // pred_check_branch
          %240 = sbr.rel (%p238) target = $region28
        $region27: #{tpu_custom_call.1} parent=19 // pred_region
          %s241 = smul.u32 3, %s26
          %p242 = scmp.lt.s32.totalorder %s241, 17
          %s243 = scalar_select %p242, %s241, 17
          %s244 = smul.addr %s243, 8
          %s245 = scalar_lea.vmem %s2, %s244
          %s246 = smul.u32 3, %s26
        $region28: #{tpu_custom_call.1} parent=19 // pred_fallthru
          _
        // Predicated region
        $region29: #{tpu_custom_call.1} parent=19 // pred_check
          %p247 = pneg %p100
        $region30: #{tpu_custom_call.1} parent=19 // pred_check_branch
          %249 = sbr.rel (%p247) target = $region32
        $region31: #{tpu_custom_call.1} parent=19 // pred_region
          %s250 = sld [smem:[#allocation3 + %s26]]
          %p251 = scmp.lt.s32.totalorder %s250, 5
          %s252 = scalar_select %p251, %s250, 5
          %s253 = smul.addr %s252, 4
          %s254 = smul.addr %s253, 4
          %s255 = scalar_lea.vmem %s3, %s254
          %s256 = sld [smem:[#allocation3 + %s26]]
        $region32: #{tpu_custom_call.1} parent=19 // pred_fallthru
          _
        // Predicated region
        $region33: #{tpu_custom_call.1} parent=19 // pred_check
          %p257 = pneg %p128
        $region34: #{tpu_custom_call.1} parent=19 // pred_check_branch
          %259 = sbr.rel (%p257) target = $region36
        $region35: #{tpu_custom_call.1} parent=19 // pred_region
          %s260 = sld [smem:[#allocation3 + %s26]]
          %p261 = scmp.lt.s32.totalorder %s260, 5
          %s262 = scalar_select %p261, %s260, 5
          %s263 = scalar_lea.vmem %s4, %s262
          %s264 = sld [smem:[#allocation3 + %s26]]
        $region36: #{tpu_custom_call.1} parent=19 // pred_fallthru
          _
      $region20: #{tpu_custom_call.1} parent=5 // pred_fallthru
        _
      %p265 = scmp.le.s32.totalorder 1, %s26
      %p266 = scmp.lt.s32.totalorder %s26, 7
      %p267 = pnand %p265, %p266
      %p268 = pneg %p267
      // Predicated region
      $region37: #{tpu_custom_call.1} parent=5 // pred_check
        _
      $region38: #{tpu_custom_call.1} parent=5 // pred_check_branch
        %270 = sbr.rel (%p267) target = $region40
      $region39: #{tpu_custom_call.1} parent=5 // pred_region
        %s271 = ssub.s32 %s26, 1
        %s272 = smul.u32 3, %s31
        %p273 = scmp.lt.s32.totalorder %s272, 17
        %s274 = scalar_select %p273, %s272, 17
        %s275 = smul.addr %s274, 8
        %s276 = scalar_lea.vmem %s1, %s275
        %p277 = pneg %p52
        %p278 = pneg %p49
        %s279 = smul.u32 3, %s31
        %p280 = scmp.lt.s32.totalorder %s279, 17
        %s281 = scalar_select %p280, %s279, 17
        %s282 = smul.addr %s281, 8
        %s283 = scalar_lea.vmem %s2, %s282
        %p284 = pneg %p78
        %p285 = pneg %p75
        %s286 = sld [smem:[#allocation3 + %s31]]
        %p287 = scmp.lt.s32.totalorder %s286, 5
        %s288 = scalar_select %p287, %s286, 5
        %s289 = smul.addr %s288, 4
        %s290 = smul.addr %s289, 4
        %s291 = scalar_lea.vmem %s3, %s290
        %p292 = pneg %p106
        %p293 = pneg %p103
        %s294 = sld [smem:[#allocation3 + %s31]]
        %p295 = scmp.lt.s32.totalorder %s294, 5
        %s296 = scalar_select %p295, %s294, 5
        %s297 = scalar_lea.vmem %s4, %s296
        %p298 = pneg %p134
        %p299 = pneg %p131
        %p300 = pneg %p155
        %p301 = pneg %p152
        %p302 = pneg %p181
        %p303 = pneg %p178
        %s304 = sand.u32 %s168, 1
        %s305 = scalar_lea.sflag [#allocation5], %s304
        %s306 = sand.u32 %s168, 1
        %s307 = smul.addr %s306, 24
        %s308 = scalar_lea.vmem [#allocation4], %s307
        %p309 = pneg %p207
        %p310 = pneg %p204
        %s311 = sand.u32 %s194, 1
        %s312 = scalar_lea.sflag [#allocation7], %s311
        %s313 = sand.u32 %s194, 1
        %s314 = smul.addr %s313, 24
        %s315 = scalar_lea.vmem [#allocation6], %s314
        %s316 = smul.u32 3, %s31
        %p317 = scmp.lt.s32.totalorder %s316, 17
        %s318 = scalar_select %p317, %s316, 17
        %s319 = smul.addr %s318, 8
        %s320 = scalar_lea.vmem %s1, %s319
        %s321 = smul.u32 3, %s31
        %s322 = smul.u32 3, %s31
        %p323 = scmp.lt.s32.totalorder %s322, 17
        %s324 = scalar_select %p323, %s322, 17
        %s325 = smul.addr %s324, 8
        %s326 = scalar_lea.vmem %s2, %s325
        %s327 = smul.u32 3, %s31
        %s328 = sld [smem:[#allocation3 + %s31]]
        %p329 = scmp.lt.s32.totalorder %s328, 5
        %s330 = scalar_select %p329, %s328, 5
        %s331 = smul.addr %s330, 4
        %s332 = smul.addr %s331, 4
        %s333 = scalar_lea.vmem %s3, %s332
        %s334 = sld [smem:[#allocation3 + %s31]]
        %s335 = sld [smem:[#allocation3 + %s31]]
        %p336 = scmp.lt.s32.totalorder %s335, 5
        %s337 = scalar_select %p336, %s335, 5
        %s338 = scalar_lea.vmem %s4, %s337
        %s339 = sld [smem:[#allocation3 + %s31]]
        %s340 = smul.u32 3, %s31
        %s341 = smul.u32 3, %s31
        %v343 = vld [vmem:[%s320] sm:$0xff]
        %v344 = vld [vmem:[%s320 + $0x8] sm:$0xff]
        %v345 = vld [vmem:[%s320 + $0x10] sm:$0xff]
        %v346 = vld [vmem:[%s326] sm:$0xff]
        %v347 = vld [vmem:[%s326 + $0x8] sm:$0xff]
        %v348 = vld [vmem:[%s326 + $0x10] sm:$0xff]
        %350 = vset.pattern.permute.xlu0 0
        %351 = vperm.xlu0 %350, %v346
        %v352 = vpop.permute.xlu0 %351
        %355 = vset.pattern.permute.xlu0 0
        %356 = vperm.xlu0 %355, %v347
        %v357 = vpop.permute.xlu0 %356
        %360 = vset.pattern.permute.xlu0 0
        %361 = vperm.xlu0 %360, %v348
        %v362 = vpop.permute.xlu0 %361
        %v364 = vmul.f32 %v343, %v352
        %v365 = vmul.f32 %v344, %v357
        %v366 = vmul.f32 %v345, %v362
        %v367 = vpack.c.bf16 %v365, %v364
        %v368 = vpack.c.bf16 %v366, %v366
        %v369 = vld [vmem:[%s333] sm:$0xf]
        %v370 = vld [vmem:[%s333 + $0x4] sm:$0xf]
        %v371 = vld [vmem:[%s333 + $0x8] sm:$0xf]
        %v372 = vld [vmem:[%s333 + $0xc] sm:$0xf]
        %v377 = vunpack.c.l.b16 %v369
        %v378 = vunpack.c.l.b16 %v370
        %v379 = vunpack.c.l.b16 %v371
        %v380 = vunpack.c.l.b16 %v372
        %v381 = vpack.c.b16 %v378, %v377
        %v382 = vpack.c.b16 %v380, %v379
        %vm385 = vcmask 261120
        %v387 = vsel %vm385, %v367, 0
        %v390 = vsel %vm385, %v368, 0
        %392 = vmatprep.subr.bf16.mxu0 0
        %393 = vmatpush1.bf16.msra.mxu0 0
        %394 = vmatprep.subr.bf16.mxu0 0
        %395 = vmatpush1.bf16.msra.mxu0 0
        %396 = vmatprep.subr.bf16.mxu0 0
        %397 = vmatpush1.bf16.msra.mxu0 0
        %398 = vmatprep.subr.bf16.mxu0 0
        %399 = vmatpush1.bf16.msra.mxu0 0
        %400 = vmatprep.subr.bf16.mxu0 0
        %401 = vmatpush1.bf16.msra.mxu0 0
        %402 = vmatprep.subr.bf16.mxu0 0
        %403 = vmatpush1.bf16.msra.mxu0 0
        %404 = vmatprep.subr.bf16.mxu0 0
        %405 = vmatpush1.bf16.msra.mxu0 %v382
        %406 = vmatprep.subr.bf16.mxu0 0
        %407 = vmatpush1.bf16.msra.mxu0 %v381
        %408 = vmatprep.subr.bf16.mxu0 0
        %409 = vmatpush2.bf16.msra.mxu0 0
        %410 = vmatprep.subr.bf16.mxu0 0
        %411 = vmatpush2.bf16.msra.mxu0 0
        %412 = vmatprep.subr.bf16.mxu0 0
        %413 = vmatpush2.bf16.msra.mxu0 0
        %414 = vmatprep.subr.bf16.mxu0 0
        %415 = vmatpush2.bf16.msra.mxu0 0
        %416 = vmatprep.subr.bf16.mxu0 0
        %417 = vmatpush2.bf16.msra.mxu0 0
        %418 = vmatprep.subr.bf16.mxu0 0
        %419 = vmatpush2.bf16.msra.mxu0 0
        %420 = vmatprep.subr.bf16.mxu0 0
        %421 = vmatpush2.bf16.msra.mxu0 0
        %422 = vmatprep.subr.bf16.mxu0 0
        %423 = vmatpush2.bf16.msra.mxu0 0
        %424 = vmatprep.mubr.bf16.mxu0 0
        %425 = vmatmul.mubr.bf16.gmra.mxu0 %v387
        %v426 = vpop.f32.mrf.mxu0
        %v427 = vadd.f32 0.0, %v426
        %v428 = vpop.f32.mrf.mxu0
        %v429 = vpop.f32.mrf.mxu0
        %v430 = vadd.f32 0.0, %v429
        %v431 = vpop.f32.mrf.mxu0
        %432 = vmatprep.mubr.bf16.mxu0 0
        %433 = vmatmul.mubr.bf16.gmra.mxu0 %v390
        %v434 = vpop.f32.mrf.mxu0
        %v435 = vadd.f32 0.0, %v434
        %v436 = vpop.f32.mrf.mxu0
        %v437 = vpop.f32.mrf.mxu0
        %v438 = vpop.f32.mrf.mxu0
        %439 = vdwg.mxu0
        %440 = vst [vmem:[%s308] sm:$0xff] %v427
        %441 = vst [vmem:[%s308 + $0x8] sm:$0xff] %v430
        %442 = vst [vmem:[%s308 + $0x10] sm:$0xff] %v435
        %v443 = vld [vmem:[%s338] sm:$0x1]
        %v445 = vlaneseq
        %v446 = vshrl.u32 %v445, 7
        %v447 = vsub.s32 0, %v446
        %v448 = vrot.slane %v443, %v447
        %v450 = vpack.c.bf16 %v448, %v448
        %v451 = vld [vmem:[%s5] sm:$0xf]
        %v452 = vld [vmem:[%s5 + $0x4] sm:$0xf]
        %v453 = vld [vmem:[%s5 + $0x8] sm:$0xf]
        %v454 = vld [vmem:[%s5 + $0xc] sm:$0xf]
        %v459 = vunpack.c.l.b16 %v451
        %v460 = vunpack.c.l.b16 %v452
        %v461 = vunpack.c.l.b16 %v453
        %v462 = vunpack.c.l.b16 %v454
        %v463 = vpack.c.b16 %v460, %v459
        %v464 = vpack.c.b16 %v462, %v461
        %v468 = vsel %vm385, %v450, 0
        %470 = vmatprep.subr.bf16.mxu0 0
        %471 = vmatpush1.bf16.msra.mxu0 0
        %472 = vmatprep.subr.bf16.mxu0 0
        %473 = vmatpush1.bf16.msra.mxu0 0
        %474 = vmatprep.subr.bf16.mxu0 0
        %475 = vmatpush1.bf16.msra.mxu0 0
        %476 = vmatprep.subr.bf16.mxu0 0
        %477 = vmatpush1.bf16.msra.mxu0 0
        %478 = vmatprep.subr.bf16.mxu0 0
        %479 = vmatpush1.bf16.msra.mxu0 0
        %480 = vmatprep.subr.bf16.mxu0 0
        %481 = vmatpush1.bf16.msra.mxu0 0
        %482 = vmatprep.subr.bf16.mxu0 0
        %483 = vmatpush1.bf16.msra.mxu0 %v464
        %484 = vmatprep.subr.bf16.mxu0 0
        %485 = vmatpush1.bf16.msra.mxu0 %v463
        %486 = vmatprep.subr.bf16.mxu0 0
        %487 = vmatpush2.bf16.msra.mxu0 0
        %488 = vmatprep.subr.bf16.mxu0 0
        %489 = vmatpush2.bf16.msra.mxu0 0
        %490 = vmatprep.subr.bf16.mxu0 0
        %491 = vmatpush2.bf16.msra.mxu0 0
        %492 = vmatprep.subr.bf16.mxu0 0
        %493 = vmatpush2.bf16.msra.mxu0 0
        %494 = vmatprep.subr.bf16.mxu0 0
        %495 = vmatpush2.bf16.msra.mxu0 0
        %496 = vmatprep.subr.bf16.mxu0 0
        %497 = vmatpush2.bf16.msra.mxu0 0
        %498 = vmatprep.subr.bf16.mxu0 0
        %499 = vmatpush2.bf16.msra.mxu0 0
        %500 = vmatprep.subr.bf16.mxu0 0
        %501 = vmatpush2.bf16.msra.mxu0 0
        %502 = vmatprep.mubr.bf16.mxu0 0
        %503 = vmatmul.mubr.bf16.gmra.mxu0 %v468
        %v504 = vpop.f32.mrf.mxu0
        %v505 = vadd.f32 0.0, %v504
        %v506 = vpop.f32.mrf.mxu0
        %v507 = vpop.f32.mrf.mxu0
        %v508 = vadd.f32 0.0, %v507
        %v509 = vpop.f32.mrf.mxu0
        %510 = vmatprep.mubr.bf16.mxu0 0
        %511 = vmatmul.mubr.bf16.gmra.mxu0 %v468
        %v512 = vpop.f32.mrf.mxu0
        %v513 = vadd.f32 0.0, %v512
        %v514 = vpop.f32.mrf.mxu0
        %v515 = vpop.f32.mrf.mxu0
        %v516 = vpop.f32.mrf.mxu0
        %517 = vdwg.mxu0
        %518 = vst [vmem:[%s315] sm:$0xff] %v505
        %519 = vst [vmem:[%s315 + $0x8] sm:$0xff] %v508
        %520 = vst [vmem:[%s315 + $0x10] sm:$0xff] %v513
        %s521 = sand.u32 %s168, 1
        %s522 = scalar_lea.sflag [#allocation5], %s521
        %s523 = sand.u32 %s168, 1
        %s524 = smul.addr %s523, 24
        %s525 = scalar_lea.vmem [#allocation4], %s524
        %s526 = sand.u32 %s194, 1
        %s527 = scalar_lea.sflag [#allocation7], %s526
        %s528 = sand.u32 %s194, 1
        %s529 = smul.addr %s528, 24
        %s530 = scalar_lea.vmem [#allocation6], %s529
        // Predicated region
        $region41: #{tpu_custom_call.1} parent=39 // pred_check
          %p531 = pneg %p178
        $region42: #{tpu_custom_call.1} parent=39 // pred_check_branch
          %533 = sbr.rel (%p531) target = $region44
        $region43: #{tpu_custom_call.1} parent=39 // pred_region
          %s534 = smul.u32 3, %s31
          %s536 = ssub.s32 384, 384
          %537 = vsyncadd %s522, %s536
          %s538 = smul.addr %s534, 128
          %s539 = scalar_lea.hbm %s6, %s538
          %s540 = sshll.u32 %s525, 4
          %s541 = int_to_ptr.vmem [resolvable:$true] %s540
          %546 = dma.vmem_to_hbm [thread:$0]  %s541, 384, %s539, %s522, 128, 128, 8
        $region44: #{tpu_custom_call.1} parent=39 // pred_fallthru
          _
        // Predicated region
        $region45: #{tpu_custom_call.1} parent=39 // pred_check
          %p547 = pneg %p204
        $region46: #{tpu_custom_call.1} parent=39 // pred_check_branch
          %549 = sbr.rel (%p547) target = $region48
        $region47: #{tpu_custom_call.1} parent=39 // pred_region
          %s550 = smul.u32 3, %s31
          %s552 = ssub.s32 384, 384
          %553 = vsyncadd %s527, %s552
          %s554 = smul.addr %s550, 128
          %s555 = scalar_lea.hbm %s7, %s554
          %s556 = sshll.u32 %s530, 4
          %s557 = int_to_ptr.vmem [resolvable:$true] %s556
          %562 = dma.vmem_to_hbm [thread:$0]  %s557, 384, %s555, %s527, 128, 128, 8
        $region48: #{tpu_custom_call.1} parent=39 // pred_fallthru
          _
      $region40: #{tpu_custom_call.1} parent=5 // pred_fallthru
        _
      %p563 = scmp.le.s32.totalorder 2, %s26
      // Predicated region
      $region49: #{tpu_custom_call.1} parent=5 // pred_check
        %p564 = pneg %p563
      $region50: #{tpu_custom_call.1} parent=5 // pred_check_branch
        %566 = sbr.rel (%p564) target = $region52
      $region51: #{tpu_custom_call.1} parent=5 // pred_region
        %s567 = ssub.s32 %s26, 2
        // Predicated region
        $region53: #{tpu_custom_call.1} parent=51 // pred_check
          %p568 = pneg %p184
        $region54: #{tpu_custom_call.1} parent=51 // pred_check_branch
          %570 = sbr.rel (%p568) target = $region56
        $region55: #{tpu_custom_call.1} parent=51 // pred_region
          %s571 = sand.u32 %s169, 1
          %s572 = scalar_lea.sflag [#allocation5], %s571
          %s573 = sand.u32 %s169, 1
          %s574 = smul.addr %s573, 24
          %s575 = scalar_lea.vmem [#allocation4], %s574
          %576 = dma.done %s572, 384
        $region56: #{tpu_custom_call.1} parent=51 // pred_fallthru
          _
        // Predicated region
        $region57: #{tpu_custom_call.1} parent=51 // pred_check
          %p577 = pneg %p210
        $region58: #{tpu_custom_call.1} parent=51 // pred_check_branch
          %579 = sbr.rel (%p577) target = $region60
        $region59: #{tpu_custom_call.1} parent=51 // pred_region
          %s580 = sand.u32 %s195, 1
          %s581 = scalar_lea.sflag [#allocation7], %s580
          %s582 = sand.u32 %s195, 1
          %s583 = smul.addr %s582, 24
          %s584 = scalar_lea.vmem [#allocation6], %s583
          %585 = dma.done %s581, 384
        $region60: #{tpu_custom_call.1} parent=51 // pred_fallthru
          _
      $region52: #{tpu_custom_call.1} parent=5 // pred_fallthru
        _
    $region6: #{tpu_custom_call.1} parent=1 // loop_footer
      %s30 = sadd.s32 1, %s26
    $region7: #{tpu_custom_call.1} parent=1 // loop_footer_branch
      %25 = sbr.rel target = $region3
    $region8: #{tpu_custom_call.1} parent=1 // loop_exit
      _
    %586 = vsyncpa [#allocation5], 1
    %s587 = scalar_lea.sflag [#allocation5], 1
    %588 = vsyncpa %s587, 1
    %589 = vsyncpa [#allocation7], 1
    %s590 = scalar_lea.sflag [#allocation7], 1
    %591 = vsyncpa %s590, 1

</llo_original>
